<compile_context>
chip_gen: v5e
topology: v5e:2x2
jax: 0.10.0
libtpu: 0.0.40
codegen_flags: <defaults>
</compile_context>

<pallas_src>
import jax
import jax.numpy as jnp
from jax.experimental import pallas as pl
from jax.experimental.pallas import tpu as pltpu

N_FILTERS = 8          # hp.N_FILTERS (synthetic, small)
BN_EPS = 1e-5


def residual_block_kernel(xpad_ref, res_ref, w_ref, shift_ref, o_ref):
    """Fused 3x3 conv (3 dy-band matmuls) + folded BN + residual add + ReLU.

    xpad_ref  : (N, H+2, (W+2)*C)  zero-padded input, lanes flattened as (u, ci)
    res_ref   : (N, H,   W*C)      residual input, lane-dense (w, co)
    w_ref     : (3, (W+2)*C, W*C)  per-dy block-banded weights, BN scale folded
    shift_ref : (1, W*C)           folded BN shift, tiled over w
    o_ref     : (N, H,   W*C)      output, lane-dense
    """
    N, Hp2, _ = xpad_ref.shape
    H = Hp2 - 2
    for n in range(N):                      # N is tiny and static; traced inline
        # 3x3 "same" conv == three shifted-row band matmuls on the MXU.
        acc = jnp.dot(xpad_ref[n, pl.ds(0, H), :], w_ref[0],
                      preferred_element_type=jnp.float32)
        acc = acc + jnp.dot(xpad_ref[n, pl.ds(1, H), :], w_ref[1],
                            preferred_element_type=jnp.float32)
        acc = acc + jnp.dot(xpad_ref[n, pl.ds(2, H), :], w_ref[2],
                            preferred_element_type=jnp.float32)
        # Epilogue: BN shift + residual + ReLU on the lane-dense slab.
        y = acc + shift_ref[...] + res_ref[n].astype(jnp.float32)
        o_ref[n] = jnp.maximum(y, 0.0).astype(o_ref.dtype)


def fold_residual_block_params(w_hwio, gamma, beta, running_mean, running_var,
                               W, eps=BN_EPS):
    """Build per-dy block-banded conv weights (BN scale folded) + BN shift.

    Depends only on weights / BN stats / spatial width W -- call ONCE at init,
    not per forward pass.
    """
    Kh, Kw, Ci, Co = w_hwio.shape           # (3, 3, C, C)

    # Fold BatchNorm (inference semantics) into per-channel scale/shift.
    # TODO(synk): training-mode BatchNorm (batch statistics of the conv
    # output) is not implemented; this is eval-mode (running stats) only.
    scale = gamma / jnp.sqrt(running_var + eps)                 # (C,)
    shift = beta - running_mean * scale                         # (C,)

    # wblk[dy, (u, ci), (w, co)] = w_hwio[dy, u-w, ci, co] * scale[co]
    # so each dy-band matmul output lands directly in the lane-dense (w, co)
    # layout with no in-kernel reshapes or shifted column slices.
    wf = (w_hwio * scale[None, None, None, :]).astype(jnp.float32)
    u = jnp.arange(W + 2)[:, None, None]
    wcol = jnp.arange(W)[None, :, None]
    dx = jnp.arange(Kw)[None, None, :]
    sel = (u == wcol + dx).astype(jnp.float32)                  # (W+2, W, 3)
    wblk = jnp.einsum('uwb,abio->auiwo', sel, wf)
    wblk = wblk.reshape(Kh, (W + 2) * Ci, W * Co)

    shift_row = jnp.tile(shift, (W,)).reshape(1, W * Co).astype(jnp.float32)
    return wblk, shift_row


@jax.jit
def residual_block(x_nhwc, wblk, shift_row):
    """Per-call wrapper: pad the activation, launch the fused kernel."""
    N, H, W, C = x_nhwc.shape
    WC, WC2 = W * C, (W + 2) * C

    xpad = jnp.pad(x_nhwc, ((0, 0), (1, 1), (1, 1), (0, 0)))    # (N, H+2, W+2, C)
    xpad = xpad.reshape(N, H + 2, WC2)
    res = x_nhwc.reshape(N, H, WC)                              # lane-dense residual

    out = pl.pallas_call(
        residual_block_kernel,
        out_shape=jax.ShapeDtypeStruct((N, H, WC), x_nhwc.dtype),
        in_specs=[pl.BlockSpec(memory_space=pltpu.MemorySpace.VMEM)
                  for _ in range(4)],
        out_specs=pl.BlockSpec(memory_space=pltpu.MemorySpace.VMEM),
    )(xpad, res, wblk, shift_row)

    return out.reshape(N, H, W, C)


def reference(x_nhwc, w_hwio, gamma, beta, running_mean, running_var,
              eps=BN_EPS):
    conv = jax.lax.conv_general_dilated(
        x_nhwc, w_hwio, window_strides=(1, 1), padding="SAME",
        dimension_numbers=("NHWC", "HWIO", "NHWC"))
    scale = gamma / jnp.sqrt(running_var + eps)
    shift = beta - running_mean * scale
    y = conv * scale + shift
    y = y + x_nhwc
    return jnp.maximum(y, 0.0)


if __name__ == "__main__":
    key = jax.random.PRNGKey(0)
    k1, k2, k3, k4, k5, k6 = jax.random.split(key, 6)

    N, C, H, W = 2, N_FILTERS, 16, 16

    # PyTorch-convention input (NCHW) and conv weight (OIHW), built in-script.
    x_nchw = jax.random.normal(k1, (N, C, H, W), dtype=jnp.float32)
    w_oihw = jax.random.normal(k2, (C, C, 3, 3), dtype=jnp.float32) * 0.1

    gamma = 1.0 + 0.1 * jax.random.normal(k3, (C,), dtype=jnp.float32)
    beta = 0.1 * jax.random.normal(k4, (C,), dtype=jnp.float32)
    running_mean = 0.1 * jax.random.normal(k5, (C,), dtype=jnp.float32)
    running_var = 1.0 + 0.1 * jax.random.uniform(k6, (C,), dtype=jnp.float32)

    # Layout conversion (glue): NCHW -> NHWC, OIHW -> HWIO
    x_nhwc = jnp.transpose(x_nchw, (0, 2, 3, 1))
    w_hwio = jnp.transpose(w_oihw, (2, 3, 1, 0))

    # One-time parameter folding (init-time, not per forward).
    wblk, shift_row = fold_residual_block_params(
        w_hwio, gamma, beta, running_mean, running_var, W)
    wblk = jax.block_until_ready(wblk)

    out = residual_block(x_nhwc, wblk, shift_row)
    out = jax.block_until_ready(out)

    ref = reference(x_nhwc, w_hwio, gamma, beta, running_mean, running_var)
    ref = jax.block_until_ready(ref)

    assert out.shape == (N, H, W, C)
    assert jnp.allclose(out, ref, atol=1e-4, rtol=1e-4), "mismatch vs reference"

    print("KERNEL_OK")
</pallas_src>

<mosaic_0001>
module attributes {stable_mosaic.version = 11 : i64} {
  func.func @residual_block_kernel(%arg0: memref<2x18x144xf32, #tpu.memory_space<vmem>>, %arg1: memref<2x16x128xf32, #tpu.memory_space<vmem>>, %arg2: memref<3x144x128xf32, #tpu.memory_space<vmem>>, %arg3: memref<1x128xf32, #tpu.memory_space<vmem>>, %arg4: memref<2x16x128xf32, #tpu.memory_space<vmem>>) attributes {dimension_semantics = [], scalar_prefetch = 0 : i64, scratch_operands = 0 : i64, tpu.core_type = #tpu.core_type<tc>} {
    %c0 = arith.constant 0 : index
    %c0_0 = arith.constant 0 : index
    %c0_1 = arith.constant 0 : index
    %0 = vector.load %arg0[%c0, %c0_0, %c0_1] : memref<2x18x144xf32, #tpu.memory_space<vmem>>, vector<1x16x144xf32>
    %1 = vector.shape_cast %0 : vector<1x16x144xf32> to vector<16x144xf32>
    %c0_2 = arith.constant 0 : index
    %c0_3 = arith.constant 0 : index
    %c0_4 = arith.constant 0 : index
    %2 = vector.load %arg2[%c0_2, %c0_3, %c0_4] : memref<3x144x128xf32, #tpu.memory_space<vmem>>, vector<1x144x128xf32>
    %3 = vector.shape_cast %2 : vector<1x144x128xf32> to vector<144x128xf32>
    %cst = arith.constant dense<0.000000e+00> : vector<16x128xf32>
    %4 = tpu.matmul %1, %3, %cst {dimension_numbers = #tpu.dot_dimension_numbers<[1], [0], [0], [1], [0, 0, 1, 1], [], []>} : vector<16x144xf32>, vector<144x128xf32>, vector<16x128xf32> -> vector<16x128xf32>
    %c0_5 = arith.constant 0 : index
    %c1 = arith.constant 1 : index
    %c0_6 = arith.constant 0 : index
    %5 = vector.load %arg0[%c0_5, %c1, %c0_6] : memref<2x18x144xf32, #tpu.memory_space<vmem>>, vector<1x16x144xf32>
    %6 = vector.shape_cast %5 : vector<1x16x144xf32> to vector<16x144xf32>
    %c1_7 = arith.constant 1 : index
    %c0_8 = arith.constant 0 : index
    %c0_9 = arith.constant 0 : index
    %7 = vector.load %arg2[%c1_7, %c0_8, %c0_9] : memref<3x144x128xf32, #tpu.memory_space<vmem>>, vector<1x144x128xf32>
    %8 = vector.shape_cast %7 : vector<1x144x128xf32> to vector<144x128xf32>
    %cst_10 = arith.constant dense<0.000000e+00> : vector<16x128xf32>
    %9 = tpu.matmul %6, %8, %cst_10 {dimension_numbers = #tpu.dot_dimension_numbers<[1], [0], [0], [1], [0, 0, 1, 1], [], []>} : vector<16x144xf32>, vector<144x128xf32>, vector<16x128xf32> -> vector<16x128xf32>
    %10 = arith.addf %4, %9 : vector<16x128xf32>
    %c0_11 = arith.constant 0 : index
    %c2 = arith.constant 2 : index
    %c0_12 = arith.constant 0 : index
    %11 = vector.load %arg0[%c0_11, %c2, %c0_12] : memref<2x18x144xf32, #tpu.memory_space<vmem>>, vector<1x16x144xf32>
    %12 = vector.shape_cast %11 : vector<1x16x144xf32> to vector<16x144xf32>
    %c2_13 = arith.constant 2 : index
    %c0_14 = arith.constant 0 : index
    %c0_15 = arith.constant 0 : index
    %13 = vector.load %arg2[%c2_13, %c0_14, %c0_15] : memref<3x144x128xf32, #tpu.memory_space<vmem>>, vector<1x144x128xf32>
    %14 = vector.shape_cast %13 : vector<1x144x128xf32> to vector<144x128xf32>
    %cst_16 = arith.constant dense<0.000000e+00> : vector<16x128xf32>
    %15 = tpu.matmul %12, %14, %cst_16 {dimension_numbers = #tpu.dot_dimension_numbers<[1], [0], [0], [1], [0, 0, 1, 1], [], []>} : vector<16x144xf32>, vector<144x128xf32>, vector<16x128xf32> -> vector<16x128xf32>
    %16 = arith.addf %10, %15 : vector<16x128xf32>
    %c0_17 = arith.constant 0 : index
    %c0_18 = arith.constant 0 : index
    %17 = vector.load %arg3[%c0_17, %c0_18] : memref<1x128xf32, #tpu.memory_space<vmem>>, vector<1x128xf32>
    %18 = vector.broadcast %17 : vector<1x128xf32> to vector<16x128xf32>
    %19 = arith.addf %16, %18 : vector<16x128xf32>
    %c0_19 = arith.constant 0 : index
    %c0_20 = arith.constant 0 : index
    %c0_21 = arith.constant 0 : index
    %20 = vector.load %arg1[%c0_19, %c0_20, %c0_21] : memref<2x16x128xf32, #tpu.memory_space<vmem>>, vector<1x16x128xf32>
    %21 = vector.shape_cast %20 : vector<1x16x128xf32> to vector<16x128xf32>
    %22 = arith.addf %19, %21 : vector<16x128xf32>
    %cst_22 = arith.constant 0.000000e+00 : f32
    %23 = vector.broadcast %cst_22 : f32 to vector<16x128xf32>
    %24 = arith.maximumf %22, %23 : vector<16x128xf32>
    %c0_23 = arith.constant 0 : index
    %c0_24 = arith.constant 0 : index
    %c0_25 = arith.constant 0 : index
    %25 = vector.load %arg4[%c0_23, %c0_24, %c0_25] : memref<2x16x128xf32, #tpu.memory_space<vmem>>, vector<1x16x128xf32>
    %26 = vector.shape_cast %25 : vector<1x16x128xf32> to vector<16x128xf32>
    %27 = vector.shape_cast %24 : vector<16x128xf32> to vector<1x16x128xf32>
    tpu.vector_store %arg4[%c0_23, %c0_24, %c0_25], %27 {strides = array<i32>} : memref<2x16x128xf32, #tpu.memory_space<vmem>>, vector<1x16x128xf32>,
    %c1_26 = arith.constant 1 : index
    %c0_27 = arith.constant 0 : index
    %c0_28 = arith.constant 0 : index
    %28 = vector.load %arg0[%c1_26, %c0_27, %c0_28] : memref<2x18x144xf32, #tpu.memory_space<vmem>>, vector<1x16x144xf32>
    %29 = vector.shape_cast %28 : vector<1x16x144xf32> to vector<16x144xf32>
    %c0_29 = arith.constant 0 : index
    %c0_30 = arith.constant 0 : index
    %c0_31 = arith.constant 0 : index
    %30 = vector.load %arg2[%c0_29, %c0_30, %c0_31] : memref<3x144x128xf32, #tpu.memory_space<vmem>>, vector<1x144x128xf32>
    %31 = vector.shape_cast %30 : vector<1x144x128xf32> to vector<144x128xf32>
    %cst_32 = arith.constant dense<0.000000e+00> : vector<16x128xf32>
    %32 = tpu.matmul %29, %31, %cst_32 {dimension_numbers = #tpu.dot_dimension_numbers<[1], [0], [0], [1], [0, 0, 1, 1], [], []>} : vector<16x144xf32>, vector<144x128xf32>, vector<16x128xf32> -> vector<16x128xf32>
    %c1_33 = arith.constant 1 : index
    %c1_34 = arith.constant 1 : index
    %c0_35 = arith.constant 0 : index
    %33 = vector.load %arg0[%c1_33, %c1_34, %c0_35] : memref<2x18x144xf32, #tpu.memory_space<vmem>>, vector<1x16x144xf32>
    %34 = vector.shape_cast %33 : vector<1x16x144xf32> to vector<16x144xf32>
    %c1_36 = arith.constant 1 : index
    %c0_37 = arith.constant 0 : index
    %c0_38 = arith.constant 0 : index
    %35 = vector.load %arg2[%c1_36, %c0_37, %c0_38] : memref<3x144x128xf32, #tpu.memory_space<vmem>>, vector<1x144x128xf32>
    %36 = vector.shape_cast %35 : vector<1x144x128xf32> to vector<144x128xf32>
    %cst_39 = arith.constant dense<0.000000e+00> : vector<16x128xf32>
    %37 = tpu.matmul %34, %36, %cst_39 {dimension_numbers = #tpu.dot_dimension_numbers<[1], [0], [0], [1], [0, 0, 1, 1], [], []>} : vector<16x144xf32>, vector<144x128xf32>, vector<16x128xf32> -> vector<16x128xf32>
    %38 = arith.addf %32, %37 : vector<16x128xf32>
    %c1_40 = arith.constant 1 : index
    %c2_41 = arith.constant 2 : index
    %c0_42 = arith.constant 0 : index
    %39 = vector.load %arg0[%c1_40, %c2_41, %c0_42] : memref<2x18x144xf32, #tpu.memory_space<vmem>>, vector<1x16x144xf32>
    %40 = vector.shape_cast %39 : vector<1x16x144xf32> to vector<16x144xf32>
    %c2_43 = arith.constant 2 : index
    %c0_44 = arith.constant 0 : index
    %c0_45 = arith.constant 0 : index
    %41 = vector.load %arg2[%c2_43, %c0_44, %c0_45] : memref<3x144x128xf32, #tpu.memory_space<vmem>>, vector<1x144x128xf32>
    %42 = vector.shape_cast %41 : vector<1x144x128xf32> to vector<144x128xf32>
    %cst_46 = arith.constant dense<0.000000e+00> : vector<16x128xf32>
    %43 = tpu.matmul %40, %42, %cst_46 {dimension_numbers = #tpu.dot_dimension_numbers<[1], [0], [0], [1], [0, 0, 1, 1], [], []>} : vector<16x144xf32>, vector<144x128xf32>, vector<16x128xf32> -> vector<16x128xf32>
    %44 = arith.addf %38, %43 : vector<16x128xf32>
    %c0_47 = arith.constant 0 : index
    %c0_48 = arith.constant 0 : index
    %45 = vector.load %arg3[%c0_47, %c0_48] : memref<1x128xf32, #tpu.memory_space<vmem>>, vector<1x128xf32>
    %46 = vector.broadcast %45 : vector<1x128xf32> to vector<16x128xf32>
    %47 = arith.addf %44, %46 : vector<16x128xf32>
    %c1_49 = arith.constant 1 : index
    %c0_50 = arith.constant 0 : index
    %c0_51 = arith.constant 0 : index
    %48 = vector.load %arg1[%c1_49, %c0_50, %c0_51] : memref<2x16x128xf32, #tpu.memory_space<vmem>>, vector<1x16x128xf32>
    %49 = vector.shape_cast %48 : vector<1x16x128xf32> to vector<16x128xf32>
    %50 = arith.addf %47, %49 : vector<16x128xf32>
    %cst_52 = arith.constant 0.000000e+00 : f32
    %51 = vector.broadcast %cst_52 : f32 to vector<16x128xf32>
    %52 = arith.maximumf %50, %51 : vector<16x128xf32>
    %c1_53 = arith.constant 1 : index
    %c0_54 = arith.constant 0 : index
    %c0_55 = arith.constant 0 : index
    %53 = vector.load %arg4[%c1_53, %c0_54, %c0_55] : memref<2x16x128xf32, #tpu.memory_space<vmem>>, vector<1x16x128xf32>
    %54 = vector.shape_cast %53 : vector<1x16x128xf32> to vector<16x128xf32>
    %55 = vector.shape_cast %52 : vector<16x128xf32> to vector<1x16x128xf32>
    tpu.vector_store %arg4[%c1_53, %c0_54, %c0_55], %55 {strides = array<i32>} : memref<2x16x128xf32, #tpu.memory_space<vmem>>, vector<1x16x128xf32>,
    return
  }
}

</mosaic_0001>

<llo_original>
// kernel: residual_block.1
$region0: #{residual_block.1}
  #allocation0 [shape = 'u32[]', space=smem, size = 0x4, offset = 0x4, fixed_abs, tag = 'smem constant byte address 0x4 - core index']
  #allocation1 [shape = 'u32[72,128]{1,0:T(1,128)}', space=vmem, size = 0x9000, scoped, tag = 'internal scratch']
  %s0 = inlined_call_operand.vmem [shape: f32[2,18,144], index: 0, kind: input, shape index: {}]
  %s1 = inlined_call_operand.vmem [shape: f32[2,16,128], index: 1, kind: input, shape index: {}]
  %s2 = inlined_call_operand.vmem [shape: f32[3,144,128], index: 2, kind: input, shape index: {}]
  %s3 = inlined_call_operand.vmem [shape: f32[1,128], index: 3, kind: input, shape index: {}]
  %s4 = inlined_call_operand.vmem [shape: f32[2,16,128], index: 4, kind: output, shape index: {}]
  %s5 = sld [smem:[#allocation0]]
  $region26: #{residual_block.1} parent=0
    _
  %s7 = ssub.s32 1, %s5
  %s8 = scalar_select 0, %s7, %s5
  // Predicated region
  $region2: #{residual_block.1} parent=0 // pred_check
    _
  $region3: #{residual_block.1} parent=0 // pred_check_branch
    %10 = sbr.rel (0) target = $region5
  $region4: #{residual_block.1} parent=0 // pred_region
    _
  $region5: #{residual_block.1} parent=0 // pred_fallthru
    _
  // Predicated region
  $region6: #{residual_block.1} parent=0 // pred_check
    _
  $region7: #{residual_block.1} parent=0 // pred_check_branch
    %12 = sbr.rel (0) target = $region9
  $region8: #{residual_block.1} parent=0 // pred_region
    _
  $region9: #{residual_block.1} parent=0 // pred_fallthru
    _
  // Predicated region
  $region10: #{residual_block.1} parent=0 // pred_check
    _
  $region11: #{residual_block.1} parent=0 // pred_check_branch
    %14 = sbr.rel (0) target = $region13
  $region12: #{residual_block.1} parent=0 // pred_region
    _
  $region13: #{residual_block.1} parent=0 // pred_fallthru
    _
  // Predicated region
  $region14: #{residual_block.1} parent=0 // pred_check
    _
  $region15: #{residual_block.1} parent=0 // pred_check_branch
    %16 = sbr.rel (0) target = $region17
  $region16: #{residual_block.1} parent=0 // pred_region
    _
  $region17: #{residual_block.1} parent=0 // pred_fallthru
    _
  %v17 = vld [vmem:[%s0] sm:$0xff]
  %v18 = vld [vmem:[%s0 + $0x8] sm:$0xff]
  %v19 = vld [vmem:[%s0 + $0x10] sm:$0xff]
  %v20 = vld [vmem:[%s0 + $0x18] sm:$0xff]
  %v21 = vld [vmem:[%s2] sm:$0xff]
  %v22 = vld [vmem:[%s2 + $0x8] sm:$0xff]
  %v23 = vld [vmem:[%s2 + $0x10] sm:$0xff]
  %v24 = vld [vmem:[%s2 + $0x18] sm:$0xff]
  %v25 = vld [vmem:[%s2 + $0x20] sm:$0xff]
  %v26 = vld [vmem:[%s2 + $0x28] sm:$0xff]
  %v27 = vld [vmem:[%s2 + $0x30] sm:$0xff]
  %v28 = vld [vmem:[%s2 + $0x38] sm:$0xff]
  %v29 = vld [vmem:[%s2 + $0x40] sm:$0xff]
  %v30 = vld [vmem:[%s2 + $0x48] sm:$0xff]
  %v31 = vld [vmem:[%s2 + $0x50] sm:$0xff]
  %v32 = vld [vmem:[%s2 + $0x58] sm:$0xff]
  %v33 = vld [vmem:[%s2 + $0x60] sm:$0xff]
  %v34 = vld [vmem:[%s2 + $0x68] sm:$0xff]
  %v35 = vld [vmem:[%s2 + $0x70] sm:$0xff]
  %v36 = vld [vmem:[%s2 + $0x78] sm:$0xff]
  %v37 = vld [vmem:[%s2 + $0x80] sm:$0xff]
  %v38 = vld [vmem:[%s2 + $0x88] sm:$0xff]
  %v39 = vld [vmem:[%s0] sm:$0xfe]
  %v40 = vld [vmem:[%s0 + $0x8] sm:$0xfe]
  %v41 = vld [vmem:[%s0 + $0x20] sm:$0x1]
  %v42 = vld [vmem:[%s0 + $0x28] sm:$0x1]
  %s43 = scalar_lea.vmem %s2, 144
  %v44 = vld [vmem:[%s43] sm:$0xff]
  %v45 = vld [vmem:[%s43 + $0x8] sm:$0xff]
  %v46 = vld [vmem:[%s43 + $0x10] sm:$0xff]
  %v47 = vld [vmem:[%s43 + $0x18] sm:$0xff]
  %v48 = vld [vmem:[%s43 + $0x20] sm:$0xff]
  %v49 = vld [vmem:[%s43 + $0x28] sm:$0xff]
  %v50 = vld [vmem:[%s43 + $0x30] sm:$0xff]
  %v51 = vld [vmem:[%s43 + $0x38] sm:$0xff]
  %v52 = vld [vmem:[%s43 + $0x40] sm:$0xff]
  %v53 = vld [vmem:[%s43 + $0x48] sm:$0xff]
  %v54 = vld [vmem:[%s43 + $0x50] sm:$0xff]
  %v55 = vld [vmem:[%s43 + $0x58] sm:$0xff]
  %v56 = vld [vmem:[%s43 + $0x60] sm:$0xff]
  %v57 = vld [vmem:[%s43 + $0x68] sm:$0xff]
  %v58 = vld [vmem:[%s43 + $0x70] sm:$0xff]
  %v59 = vld [vmem:[%s43 + $0x78] sm:$0xff]
  %v60 = vld [vmem:[%s43 + $0x80] sm:$0xff]
  %v61 = vld [vmem:[%s43 + $0x88] sm:$0xff]
  %vm68 = vcmask 1046528
  %v69 = vrot.slane %v39, 1
  %v70 = vrot.slane %v19, 1
  %v71 = vsel %vm68, %v69, %v70
  %v72 = vrot.slane %v40, 1
  %v73 = vrot.slane %v20, 1
  %v74 = vsel %vm68, %v72, %v73
  %v75 = vrot.slane %v41, 1
  %v76 = vsel %vm68, %v70, %v75
  %v77 = vrot.slane %v42, 1
  %v78 = vsel %vm68, %v73, %v77
  %vm81 = vcmask 130048
  %v82 = vsel %vm81, %v74, 0
  %v84 = vsel %vm81, %v78, 0
  %86 = vmatpush.msra.mxu0 %v59
  %87 = vmatpush.msra.mxu0 %v58
  %88 = vmatpush.msra.mxu0 %v57
  %89 = vmatpush.msra.mxu0 %v56
  %90 = vmatpush.msra.mxu0 %v55
  %91 = vmatpush.msra.mxu0 %v54
  %92 = vmatpush.msra.mxu0 %v53
  %93 = vmatpush.msra.mxu0 %v52
  %94 = vmatpush.msra.mxu0 %v51
  %95 = vmatpush.msra.mxu0 %v50
  %96 = vmatpush.msra.mxu0 %v49
  %97 = vmatpush.msra.mxu0 %v48
  %98 = vmatpush.msra.mxu0 %v47
  %99 = vmatpush.msra.mxu0 %v46
  %100 = vmatpush.msra.mxu0 %v45
  %101 = vmatpush.msra.mxu0 %v44
  %102 = vmatmul.f32.gmra.mxu0 %v71
  %v103 = vpop.f32.mrf.mxu0
  %v104 = vadd.f32 0.0, %v103
  %105 = vmatmul.f32.gmra.mxu0 %v76
  %v106 = vpop.f32.mrf.mxu0
  %v107 = vadd.f32 0.0, %v106
  %108 = vdwg.mxu0
  %109 = vmatpush.msra.mxu0 0.0
  %110 = vmatpush.msra.mxu0 0.0
  %111 = vmatpush.msra.mxu0 0.0
  %112 = vmatpush.msra.mxu0 0.0
  %113 = vmatpush.msra.mxu0 0.0
  %114 = vmatpush.msra.mxu0 0.0
  %115 = vmatpush.msra.mxu0 0.0
  %116 = vmatpush.msra.mxu0 0.0
  %117 = vmatpush.msra.mxu0 0.0
  %118 = vmatpush.msra.mxu0 0.0
  %119 = vmatpush.msra.mxu0 0.0
  %120 = vmatpush.msra.mxu0 0.0
  %121 = vmatpush.msra.mxu0 0.0
  %122 = vmatpush.msra.mxu0 0.0
  %123 = vmatpush.msra.mxu0 %v61
  %124 = vmatpush.msra.mxu0 %v60
  %125 = vmatmul.f32.gmra.mxu0 %v82
  %v126 = vpop.f32.mrf.mxu0
  %v127 = vadd.f32 %v104, %v126
  %128 = vmatmul.f32.gmra.mxu0 %v84
  %v129 = vpop.f32.mrf.mxu0
  %v130 = vadd.f32 %v107, %v129
  %131 = vdwg.mxu0
  %v133 = vsel %vm81, %v18, 0
  %v135 = vsel %vm81, %v20, 0
  %137 = vmatpush.msra.mxu0 %v36
  %138 = vmatpush.msra.mxu0 %v35
  %139 = vmatpush.msra.mxu0 %v34
  %140 = vmatpush.msra.mxu0 %v33
  %141 = vmatpush.msra.mxu0 %v32
  %142 = vmatpush.msra.mxu0 %v31
  %143 = vmatpush.msra.mxu0 %v30
  %144 = vmatpush.msra.mxu0 %v29
  %145 = vmatpush.msra.mxu0 %v28
  %146 = vmatpush.msra.mxu0 %v27
  %147 = vmatpush.msra.mxu0 %v26
  %148 = vmatpush.msra.mxu0 %v25
  %149 = vmatpush.msra.mxu0 %v24
  %150 = vmatpush.msra.mxu0 %v23
  %151 = vmatpush.msra.mxu0 %v22
  %152 = vmatpush.msra.mxu0 %v21
  %153 = vmatmul.f32.gmra.mxu0 %v17
  %v154 = vpop.f32.mrf.mxu0
  %v155 = vadd.f32 %v127, %v154
  %156 = vmatmul.f32.gmra.mxu0 %v19
  %v157 = vpop.f32.mrf.mxu0
  %v158 = vadd.f32 %v130, %v157
  %159 = vdwg.mxu0
  %160 = vmatpush.msra.mxu0 0.0
  %161 = vmatpush.msra.mxu0 0.0
  %162 = vmatpush.msra.mxu0 0.0
  %163 = vmatpush.msra.mxu0 0.0
  %164 = vmatpush.msra.mxu0 0.0
  %165 = vmatpush.msra.mxu0 0.0
  %166 = vmatpush.msra.mxu0 0.0
  %167 = vmatpush.msra.mxu0 0.0
  %168 = vmatpush.msra.mxu0 0.0
  %169 = vmatpush.msra.mxu0 0.0
  %170 = vmatpush.msra.mxu0 0.0
  %171 = vmatpush.msra.mxu0 0.0
  %172 = vmatpush.msra.mxu0 0.0
  %173 = vmatpush.msra.mxu0 0.0
  %174 = vmatpush.msra.mxu0 %v38
  %175 = vmatpush.msra.mxu0 %v37
  %176 = vmatmul.f32.gmra.mxu0 %v133
  %v177 = vpop.f32.mrf.mxu0
  %v178 = vadd.f32 %v155, %v177
  %179 = vmatmul.f32.gmra.mxu0 %v135
  %v180 = vpop.f32.mrf.mxu0
  %v181 = vadd.f32 %v158, %v180
  %182 = vdwg.mxu0
  %v183 = vld [vmem:[%s0] sm:$0xfc]
  %v184 = vld [vmem:[%s0 + $0x8] sm:$0xfc]
  %v185 = vld [vmem:[%s0 + $0x20] sm:$0x3]
  %v186 = vld [vmem:[%s0 + $0x28] sm:$0x3]
  %s187 = scalar_lea.vmem %s2, 288
  %v188 = vld [vmem:[%s187] sm:$0xff]
  %v189 = vld [vmem:[%s187 + $0x8] sm:$0xff]
  %v190 = vld [vmem:[%s187 + $0x10] sm:$0xff]
  %v191 = vld [vmem:[%s187 + $0x18] sm:$0xff]
  %v192 = vld [vmem:[%s187 + $0x20] sm:$0xff]
  %v193 = vld [vmem:[%s187 + $0x28] sm:$0xff]
  %v194 = vld [vmem:[%s187 + $0x30] sm:$0xff]
  %v195 = vld [vmem:[%s187 + $0x38] sm:$0xff]
  %v196 = vld [vmem:[%s187 + $0x40] sm:$0xff]
  %v197 = vld [vmem:[%s187 + $0x48] sm:$0xff]
  %v198 = vld [vmem:[%s187 + $0x50] sm:$0xff]
  %v199 = vld [vmem:[%s187 + $0x58] sm:$0xff]
  %v200 = vld [vmem:[%s187 + $0x60] sm:$0xff]
  %v201 = vld [vmem:[%s187 + $0x68] sm:$0xff]
  %v202 = vld [vmem:[%s187 + $0x70] sm:$0xff]
  %v203 = vld [vmem:[%s187 + $0x78] sm:$0xff]
  %v204 = vld [vmem:[%s187 + $0x80] sm:$0xff]
  %v205 = vld [vmem:[%s187 + $0x88] sm:$0xff]
  %vm210 = vcmask 1045504
  %v211 = vrot.slane %v183, 2
  %v212 = vrot.slane %v19, 2
  %v213 = vsel %vm210, %v211, %v212
  %v214 = vrot.slane %v184, 2
  %v215 = vrot.slane %v20, 2
  %v216 = vsel %vm210, %v214, %v215
  %v217 = vrot.slane %v185, 2
  %v218 = vsel %vm210, %v212, %v217
  %v219 = vrot.slane %v186, 2
  %v220 = vsel %vm210, %v215, %v219
  %v223 = vsel %vm81, %v216, 0
  %v225 = vsel %vm81, %v220, 0
  %227 = vmatpush.msra.mxu0 %v203
  %228 = vmatpush.msra.mxu0 %v202
  %229 = vmatpush.msra.mxu0 %v201
  %230 = vmatpush.msra.mxu0 %v200
  %231 = vmatpush.msra.mxu0 %v199
  %232 = vmatpush.msra.mxu0 %v198
  %233 = vmatpush.msra.mxu0 %v197
  %234 = vmatpush.msra.mxu0 %v196
  %235 = vmatpush.msra.mxu0 %v195
  %236 = vmatpush.msra.mxu0 %v194
  %237 = vmatpush.msra.mxu0 %v193
  %238 = vmatpush.msra.mxu0 %v192
  %239 = vmatpush.msra.mxu0 %v191
  %240 = vmatpush.msra.mxu0 %v190
  %241 = vmatpush.msra.mxu0 %v189
  %242 = vmatpush.msra.mxu0 %v188
  %243 = vmatmul.f32.gmra.mxu0 %v213
  %v244 = vpop.f32.mrf.mxu0
  %v245 = vadd.f32 0.0, %v244
  %246 = vmatmul.f32.gmra.mxu0 %v218
  %v247 = vpop.f32.mrf.mxu0
  %v248 = vadd.f32 0.0, %v247
  %249 = vdwg.mxu0
  %250 = vmatpush.msra.mxu0 0.0
  %251 = vmatpush.msra.mxu0 0.0
  %252 = vmatpush.msra.mxu0 0.0
  %253 = vmatpush.msra.mxu0 0.0
  %254 = vmatpush.msra.mxu0 0.0
  %255 = vmatpush.msra.mxu0 0.0
  %256 = vmatpush.msra.mxu0 0.0
  %257 = vmatpush.msra.mxu0 0.0
  %258 = vmatpush.msra.mxu0 0.0
  %259 = vmatpush.msra.mxu0 0.0
  %260 = vmatpush.msra.mxu0 0.0
  %261 = vmatpush.msra.mxu0 0.0
  %262 = vmatpush.msra.mxu0 0.0
  %263 = vmatpush.msra.mxu0 0.0
  %264 = vmatpush.msra.mxu0 %v205
  %265 = vmatpush.msra.mxu0 %v204
  %266 = vmatmul.f32.gmra.mxu0 %v223
  %v267 = vpop.f32.mrf.mxu0
  %v268 = vadd.f32 %v245, %v267
  %269 = vmatmul.f32.gmra.mxu0 %v225
  %v270 = vpop.f32.mrf.mxu0
  %v271 = vadd.f32 %v248, %v270
  %272 = vdwg.mxu0
  %v273 = vadd.f32 %v178, %v268
  %v274 = vadd.f32 %v181, %v271
  %v275 = vld [vmem:[%s3] sm:$0x1]
  %v277 = vperm.slane %v275, 0
  %v279 = vadd.f32 %v273, %v277
  %v280 = vadd.f32 %v274, %v277
  %v281 = vld [vmem:[%s1] sm:$0xff]
  %v282 = vld [vmem:[%s1 + $0x8] sm:$0xff]
  %v283 = vadd.f32 %v279, %v281
  %v284 = vadd.f32 %v280, %v282
  %v285 = vmax.f32 %v283, 0.0
  %v286 = vmax.f32 %v284, 0.0
  %287 = vst [vmem:[%s4] sm:$0xff] %v285
  %288 = vst [vmem:[%s4 + $0x8] sm:$0xff] %v286
  %s289 = scalar_lea.vmem %s0, 48
  %v290 = vld [vmem:[%s289] sm:$0xff]
  %v291 = vld [vmem:[%s289 + $0x8] sm:$0xff]
  %v292 = vld [vmem:[%s289 + $0x10] sm:$0xff]
  %v293 = vld [vmem:[%s289 + $0x18] sm:$0xff]
  %v294 = vld [vmem:[%s2] sm:$0xff]
  %v295 = vld [vmem:[%s2 + $0x8] sm:$0xff]
  %v296 = vld [vmem:[%s2 + $0x10] sm:$0xff]
  %v297 = vld [vmem:[%s2 + $0x18] sm:$0xff]
  %v298 = vld [vmem:[%s2 + $0x20] sm:$0xff]
  %v299 = vld [vmem:[%s2 + $0x28] sm:$0xff]
  %v300 = vld [vmem:[%s2 + $0x30] sm:$0xff]
  %v301 = vld [vmem:[%s2 + $0x38] sm:$0xff]
  %v302 = vld [vmem:[%s2 + $0x40] sm:$0xff]
  %v303 = vld [vmem:[%s2 + $0x48] sm:$0xff]
  %v304 = vld [vmem:[%s2 + $0x50] sm:$0xff]
  %v305 = vld [vmem:[%s2 + $0x58] sm:$0xff]
  %v306 = vld [vmem:[%s2 + $0x60] sm:$0xff]
  %v307 = vld [vmem:[%s2 + $0x68] sm:$0xff]
  %v308 = vld [vmem:[%s2 + $0x70] sm:$0xff]
  %v309 = vld [vmem:[%s2 + $0x78] sm:$0xff]
  %v310 = vld [vmem:[%s2 + $0x80] sm:$0xff]
  %v311 = vld [vmem:[%s2 + $0x88] sm:$0xff]
  %v312 = vld [vmem:[%s289] sm:$0xfe]
  %v313 = vld [vmem:[%s289 + $0x8] sm:$0xfe]
  %v314 = vld [vmem:[%s289 + $0x20] sm:$0x1]
  %v315 = vld [vmem:[%s289 + $0x28] sm:$0x1]
  %v316 = vld [vmem:[%s43] sm:$0xff]
  %v317 = vld [vmem:[%s43 + $0x8] sm:$0xff]
  %v318 = vld [vmem:[%s43 + $0x10] sm:$0xff]
  %v319 = vld [vmem:[%s43 + $0x18] sm:$0xff]
  %v320 = vld [vmem:[%s43 + $0x20] sm:$0xff]
  %v321 = vld [vmem:[%s43 + $0x28] sm:$0xff]
  %v322 = vld [vmem:[%s43 + $0x30] sm:$0xff]
  %v323 = vld [vmem:[%s43 + $0x38] sm:$0xff]
  %v324 = vld [vmem:[%s43 + $0x40] sm:$0xff]
  %v325 = vld [vmem:[%s43 + $0x48] sm:$0xff]
  %v326 = vld [vmem:[%s43 + $0x50] sm:$0xff]
  %v327 = vld [vmem:[%s43 + $0x58] sm:$0xff]
  %v328 = vld [vmem:[%s43 + $0x60] sm:$0xff]
  %v329 = vld [vmem:[%s43 + $0x68] sm:$0xff]
  %v330 = vld [vmem:[%s43 + $0x70] sm:$0xff]
  %v331 = vld [vmem:[%s43 + $0x78] sm:$0xff]
  %v332 = vld [vmem:[%s43 + $0x80] sm:$0xff]
  %v333 = vld [vmem:[%s43 + $0x88] sm:$0xff]
  %v340 = vrot.slane %v312, 1
  %v341 = vrot.slane %v292, 1
  %v342 = vsel %vm68, %v340, %v341
  %v343 = vrot.slane %v313, 1
  %v344 = vrot.slane %v293, 1
  %v345 = vsel %vm68, %v343, %v344
  %v346 = vrot.slane %v314, 1
  %v347 = vsel %vm68, %v341, %v346
  %v348 = vrot.slane %v315, 1
  %v349 = vsel %vm68, %v344, %v348
  %v352 = vsel %vm81, %v345, 0
  %v354 = vsel %vm81, %v349, 0
  %356 = vmatpush.msra.mxu0 %v331
  %357 = vmatpush.msra.mxu0 %v330
  %358 = vmatpush.msra.mxu0 %v329
  %359 = vmatpush.msra.mxu0 %v328
  %360 = vmatpush.msra.mxu0 %v327
  %361 = vmatpush.msra.mxu0 %v326
  %362 = vmatpush.msra.mxu0 %v325
  %363 = vmatpush.msra.mxu0 %v324
  %364 = vmatpush.msra.mxu0 %v323
  %365 = vmatpush.msra.mxu0 %v322
  %366 = vmatpush.msra.mxu0 %v321
  %367 = vmatpush.msra.mxu0 %v320
  %368 = vmatpush.msra.mxu0 %v319
  %369 = vmatpush.msra.mxu0 %v318
  %370 = vmatpush.msra.mxu0 %v317
  %371 = vmatpush.msra.mxu0 %v316
  %372 = vmatmul.f32.gmra.mxu0 %v342
  %v373 = vpop.f32.mrf.mxu0
  %v374 = vadd.f32 0.0, %v373
  %375 = vmatmul.f32.gmra.mxu0 %v347
  %v376 = vpop.f32.mrf.mxu0
  %v377 = vadd.f32 0.0, %v376
  %378 = vdwg.mxu0
  %379 = vmatpush.msra.mxu0 0.0
  %380 = vmatpush.msra.mxu0 0.0
  %381 = vmatpush.msra.mxu0 0.0
  %382 = vmatpush.msra.mxu0 0.0
  %383 = vmatpush.msra.mxu0 0.0
  %384 = vmatpush.msra.mxu0 0.0
  %385 = vmatpush.msra.mxu0 0.0
  %386 = vmatpush.msra.mxu0 0.0
  %387 = vmatpush.msra.mxu0 0.0
  %388 = vmatpush.msra.mxu0 0.0
  %389 = vmatpush.msra.mxu0 0.0
  %390 = vmatpush.msra.mxu0 0.0
  %391 = vmatpush.msra.mxu0 0.0
  %392 = vmatpush.msra.mxu0 0.0
  %393 = vmatpush.msra.mxu0 %v333
  %394 = vmatpush.msra.mxu0 %v332
  %395 = vmatmul.f32.gmra.mxu0 %v352
  %v396 = vpop.f32.mrf.mxu0
  %v397 = vadd.f32 %v374, %v396
  %398 = vmatmul.f32.gmra.mxu0 %v354
  %v399 = vpop.f32.mrf.mxu0
  %v400 = vadd.f32 %v377, %v399
  %401 = vdwg.mxu0
  %v403 = vsel %vm81, %v291, 0
  %v405 = vsel %vm81, %v293, 0
  %407 = vmatpush.msra.mxu0 %v309
  %408 = vmatpush.msra.mxu0 %v308
  %409 = vmatpush.msra.mxu0 %v307
  %410 = vmatpush.msra.mxu0 %v306
  %411 = vmatpush.msra.mxu0 %v305
  %412 = vmatpush.msra.mxu0 %v304
  %413 = vmatpush.msra.mxu0 %v303
  %414 = vmatpush.msra.mxu0 %v302
  %415 = vmatpush.msra.mxu0 %v301
  %416 = vmatpush.msra.mxu0 %v300
  %417 = vmatpush.msra.mxu0 %v299
  %418 = vmatpush.msra.mxu0 %v298
  %419 = vmatpush.msra.mxu0 %v297
  %420 = vmatpush.msra.mxu0 %v296
  %421 = vmatpush.msra.mxu0 %v295
  %422 = vmatpush.msra.mxu0 %v294
  %423 = vmatmul.f32.gmra.mxu0 %v290
  %v424 = vpop.f32.mrf.mxu0
  %v425 = vadd.f32 %v397, %v424
  %426 = vmatmul.f32.gmra.mxu0 %v292
  %v427 = vpop.f32.mrf.mxu0
  %v428 = vadd.f32 %v400, %v427
  %429 = vdwg.mxu0
  %430 = vmatpush.msra.mxu0 0.0
  %431 = vmatpush.msra.mxu0 0.0
  %432 = vmatpush.msra.mxu0 0.0
  %433 = vmatpush.msra.mxu0 0.0
  %434 = vmatpush.msra.mxu0 0.0
  %435 = vmatpush.msra.mxu0 0.0
  %436 = vmatpush.msra.mxu0 0.0
  %437 = vmatpush.msra.mxu0 0.0
  %438 = vmatpush.msra.mxu0 0.0
  %439 = vmatpush.msra.mxu0 0.0
  %440 = vmatpush.msra.mxu0 0.0
  %441 = vmatpush.msra.mxu0 0.0
  %442 = vmatpush.msra.mxu0 0.0
  %443 = vmatpush.msra.mxu0 0.0
  %444 = vmatpush.msra.mxu0 %v311
  %445 = vmatpush.msra.mxu0 %v310
  %446 = vmatmul.f32.gmra.mxu0 %v403
  %v447 = vpop.f32.mrf.mxu0
  %v448 = vadd.f32 %v425, %v447
  %449 = vmatmul.f32.gmra.mxu0 %v405
  %v450 = vpop.f32.mrf.mxu0
  %v451 = vadd.f32 %v428, %v450
  %452 = vdwg.mxu0
  %v453 = vld [vmem:[%s289] sm:$0xfc]
  %v454 = vld [vmem:[%s289 + $0x8] sm:$0xfc]
  %v455 = vld [vmem:[%s289 + $0x20] sm:$0x3]
  %v456 = vld [vmem:[%s289 + $0x28] sm:$0x3]
  %v457 = vld [vmem:[%s187] sm:$0xff]
  %v458 = vld [vmem:[%s187 + $0x8] sm:$0xff]
  %v459 = vld [vmem:[%s187 + $0x10] sm:$0xff]
  %v460 = vld [vmem:[%s187 + $0x18] sm:$0xff]
  %v461 = vld [vmem:[%s187 + $0x20] sm:$0xff]
  %v462 = vld [vmem:[%s187 + $0x28] sm:$0xff]
  %v463 = vld [vmem:[%s187 + $0x30] sm:$0xff]
  %v464 = vld [vmem:[%s187 + $0x38] sm:$0xff]
  %v465 = vld [vmem:[%s187 + $0x40] sm:$0xff]
  %v466 = vld [vmem:[%s187 + $0x48] sm:$0xff]
  %v467 = vld [vmem:[%s187 + $0x50] sm:$0xff]
  %v468 = vld [vmem:[%s187 + $0x58] sm:$0xff]
  %v469 = vld [vmem:[%s187 + $0x60] sm:$0xff]
  %v470 = vld [vmem:[%s187 + $0x68] sm:$0xff]
  %v471 = vld [vmem:[%s187 + $0x70] sm:$0xff]
  %v472 = vld [vmem:[%s187 + $0x78] sm:$0xff]
  %v473 = vld [vmem:[%s187 + $0x80] sm:$0xff]
  %v474 = vld [vmem:[%s187 + $0x88] sm:$0xff]
  %v479 = vrot.slane %v453, 2
  %v480 = vrot.slane %v292, 2
  %v481 = vsel %vm210, %v479, %v480
  %v482 = vrot.slane %v454, 2
  %v483 = vrot.slane %v293, 2
  %v484 = vsel %vm210, %v482, %v483
  %v485 = vrot.slane %v455, 2
  %v486 = vsel %vm210, %v480, %v485
  %v487 = vrot.slane %v456, 2
  %v488 = vsel %vm210, %v483, %v487
  %v491 = vsel %vm81, %v484, 0
  %v493 = vsel %vm81, %v488, 0
  %495 = vmatpush.msra.mxu0 %v472
  %496 = vmatpush.msra.mxu0 %v471
  %497 = vmatpush.msra.mxu0 %v470
  %498 = vmatpush.msra.mxu0 %v469
  %499 = vmatpush.msra.mxu0 %v468
  %500 = vmatpush.msra.mxu0 %v467
  %501 = vmatpush.msra.mxu0 %v466
  %502 = vmatpush.msra.mxu0 %v465
  %503 = vmatpush.msra.mxu0 %v464
  %504 = vmatpush.msra.mxu0 %v463
  %505 = vmatpush.msra.mxu0 %v462
  %506 = vmatpush.msra.mxu0 %v461
  %507 = vmatpush.msra.mxu0 %v460
  %508 = vmatpush.msra.mxu0 %v459
  %509 = vmatpush.msra.mxu0 %v458
  %510 = vmatpush.msra.mxu0 %v457
  %511 = vmatmul.f32.gmra.mxu0 %v481
  %v512 = vpop.f32.mrf.mxu0
  %v513 = vadd.f32 0.0, %v512
  %514 = vmatmul.f32.gmra.mxu0 %v486
  %v515 = vpop.f32.mrf.mxu0
  %v516 = vadd.f32 0.0, %v515
  %517 = vdwg.mxu0
  %518 = vmatpush.msra.mxu0 0.0
  %519 = vmatpush.msra.mxu0 0.0
  %520 = vmatpush.msra.mxu0 0.0
  %521 = vmatpush.msra.mxu0 0.0
  %522 = vmatpush.msra.mxu0 0.0
  %523 = vmatpush.msra.mxu0 0.0
  %524 = vmatpush.msra.mxu0 0.0
  %525 = vmatpush.msra.mxu0 0.0
  %526 = vmatpush.msra.mxu0 0.0
  %527 = vmatpush.msra.mxu0 0.0
  %528 = vmatpush.msra.mxu0 0.0
  %529 = vmatpush.msra.mxu0 0.0
  %530 = vmatpush.msra.mxu0 0.0
  %531 = vmatpush.msra.mxu0 0.0
  %532 = vmatpush.msra.mxu0 %v474
  %533 = vmatpush.msra.mxu0 %v473
  %534 = vmatmul.f32.gmra.mxu0 %v491
  %v535 = vpop.f32.mrf.mxu0
  %v536 = vadd.f32 %v513, %v535
  %537 = vmatmul.f32.gmra.mxu0 %v493
  %v538 = vpop.f32.mrf.mxu0
  %v539 = vadd.f32 %v516, %v538
  %540 = vdwg.mxu0
  %v541 = vadd.f32 %v448, %v536
  %v542 = vadd.f32 %v451, %v539
  %v543 = vld [vmem:[%s3] sm:$0x1]
  %v545 = vperm.slane %v543, 0
  %v547 = vadd.f32 %v541, %v545
  %v548 = vadd.f32 %v542, %v545
  %s549 = scalar_lea.vmem %s1, 16
  %v550 = vld [vmem:[%s549] sm:$0xff]
  %v551 = vld [vmem:[%s549 + $0x8] sm:$0xff]
  %v552 = vadd.f32 %v547, %v550
  %v553 = vadd.f32 %v548, %v551
  %v554 = vmax.f32 %v552, 0.0
  %v555 = vmax.f32 %v553, 0.0
  %s556 = scalar_lea.vmem %s4, 16
  %557 = vst [vmem:[%s556] sm:$0xff] %v554
  %558 = vst [vmem:[%s556 + $0x8] sm:$0xff] %v555
  // Predicated region
  $region18: #{residual_block.1} parent=0 // pred_check
    _
  $region19: #{residual_block.1} parent=0 // pred_check_branch
    %560 = sbr.rel (0) target = $region21
  $region20: #{residual_block.1} parent=0 // pred_region
    _
  $region21: #{residual_block.1} parent=0 // pred_fallthru
    _
  // Predicated region
  $region22: #{residual_block.1} parent=0 // pred_check
    _
  $region23: #{residual_block.1} parent=0 // pred_check_branch
    %562 = sbr.rel (0) target = $region25
  $region24: #{residual_block.1} parent=0 // pred_region
    _
  $region25: #{residual_block.1} parent=0 // pred_fallthru
    _

</llo_original>
